<compile_context>
chip_gen: v5e
topology: v5e:2x2
jax: 0.10.0
libtpu: 0.0.40
codegen_flags: <defaults>
</compile_context>

<pallas_src>
from functools import partial

import jax
import jax.numpy as jnp
from jax.experimental import pallas as pl
from jax.experimental.pallas import tpu as pltpu

LANE = 128
SUBLANE = 8
TARGET_TB = 512  # per-review sweet spot for HBM-roofline utilisation


# -----------------------------------------------------------------------------
# Kernel
# -----------------------------------------------------------------------------
def ae_kernel(x_ref,
              ew1_ref, eb1_ref, ew2_ref, eb2_ref, ew3_ref, eb3_ref,
              dw1_ref, db1_ref, dw2_ref, db2_ref, dw3_ref, db3_ref,
              enc_ref, dec_ref):
    """Fused encoder+decoder forward for one batch tile.

    Encoder: in -> h1 (ReLU) -> h2 (ReLU) -> out
    Decoder: out -> h2 (ReLU) -> h1 (ReLU) -> in
    Matmuls accumulate in f32; bias add / ReLU stay f32; LHS is cast to the
    weight dtype (bf16 by default) before each MXU matmul.
    """
    cdt = ew1_ref.dtype  # compute dtype (bf16 or f32)
    x = x_ref[...]

    # --- Encoder ---
    h = jnp.dot(x, ew1_ref[...], preferred_element_type=jnp.float32) + eb1_ref[...]
    h = jnp.maximum(h, 0.0).astype(cdt)
    h = jnp.dot(h, ew2_ref[...], preferred_element_type=jnp.float32) + eb2_ref[...]
    h = jnp.maximum(h, 0.0).astype(cdt)
    enc = jnp.dot(h, ew3_ref[...], preferred_element_type=jnp.float32) + eb3_ref[...]
    enc_ref[...] = enc.astype(enc_ref.dtype)

    # --- Decoder (consumes the in-register f32 enc, cast for the MXU) ---
    h = jnp.dot(enc.astype(cdt), dw1_ref[...],
                preferred_element_type=jnp.float32) + db1_ref[...]
    h = jnp.maximum(h, 0.0).astype(cdt)
    h = jnp.dot(h, dw2_ref[...], preferred_element_type=jnp.float32) + db2_ref[...]
    h = jnp.maximum(h, 0.0).astype(cdt)
    dec = jnp.dot(h, dw3_ref[...], preferred_element_type=jnp.float32) + db3_ref[...]
    dec_ref[...] = dec.astype(dec_ref.dtype)


# -----------------------------------------------------------------------------
# Helpers
# -----------------------------------------------------------------------------
def _round_up(n, m):
    return ((n + m - 1) // m) * m


def _pad2(a, rows, cols):
    r, c = a.shape
    return jnp.pad(a, ((0, rows - r), (0, cols - c)))


def _vmem_cap_bytes():
    """75% of physical VMEM (per-generation); conservative fallback if query fails."""
    try:
        cap = int(pltpu.get_tpu_info().vmem_capacity_bytes)
    except Exception:
        cap = 64 << 20  # assume worst case (v7x: 64 MiB per TC)
    return (cap * 3) // 4


def _choose_batch_tiling(batch):
    """Pick (tile_rows, num_tiles): tile <= TARGET_TB, >=2 even-count tiles when
    the batch allows it (v7x megacore), padding waste bounded to ~1 sublane."""
    batch_su = _round_up(batch, SUBLANE)
    n_tiles = pl.cdiv(batch_su, TARGET_TB)
    if batch_su >= 2 * SUBLANE:
        n_tiles = max(2, n_tiles)
    if n_tiles > 1 and n_tiles % 2:
        n_tiles += 1
    tb = _round_up(pl.cdiv(batch_su, n_tiles), SUBLANE)
    return tb, n_tiles


def prepare_params(params, compute_dtype=jnp.bfloat16):
    """Pad (lane-dense) and cast the 12 weight/bias arrays ONCE, outside the
    per-call forward. Weights -> compute_dtype, biases stay f32 (added after
    the f32 accumulation). Padding with zeros is exact end-to-end."""
    ew1, eb1, ew2, eb2, ew3, eb3, dw1, db1, dw2, db2, dw3, db3 = params
    in_dim, h1_dim = ew1.shape
    h2_dim = ew2.shape[1]
    out_dim = ew3.shape[1]
    in_p = _round_up(in_dim, LANE)
    h1_p = _round_up(h1_dim, LANE)
    h2_p = _round_up(h2_dim, LANE)
    out_p = _round_up(out_dim, LANE)

    def pw(w, r, c):
        return _pad2(w, r, c).astype(compute_dtype)

    def pb(b, c):
        return _pad2(b, 1, c).astype(jnp.float32)

    return (
        pw(ew1, in_p, h1_p), pb(eb1, h1_p),
        pw(ew2, h1_p, h2_p), pb(eb2, h2_p),
        pw(ew3, h2_p, out_p), pb(eb3, out_p),
        pw(dw1, out_p, h2_p), pb(db1, h2_p),
        pw(dw2, h2_p, h1_p), pb(db2, h1_p),
        pw(dw3, h1_p, in_p), pb(db3, in_p),
    )


# -----------------------------------------------------------------------------
# Forward
# -----------------------------------------------------------------------------
@partial(jax.jit, static_argnames=("out_dim",))
def ae_forward(x, padded_params, *, out_dim):
    """Runs the fused AE forward pass in a single gridded Pallas kernel.

    Args:
      x: (batch, in_dim) float32.
      padded_params: output of prepare_params() (12 padded arrays).
      out_dim: original (unpadded) embedding size, for slicing the output.
    Returns:
      (encoded, decoded): ((batch, out_dim), (batch, in_dim)) float32.
    """
    batch, in_dim = x.shape
    (ew1, eb1, ew2, eb2, ew3, eb3, dw1, db1, dw2, db2, dw3, db3) = padded_params
    compute_dtype = ew1.dtype

    in_p, h1_p = ew1.shape
    h2_p = ew2.shape[1]
    out_p = ew3.shape[1]

    # --- Batch tiling: stream activations, keep weights VMEM-resident ---
    tb, n_tiles = _choose_batch_tiling(batch)
    batch_p = tb * n_tiles
    grid = (n_tiles,)

    # Only x is padded per call (weights were padded once in prepare_params).
    x_p = _pad2(x, batch_p, in_p).astype(compute_dtype)

    w_arrays = padded_params
    x_spec = pl.BlockSpec((tb, in_p), lambda b: (b, 0))
    w_specs = [pl.BlockSpec(w.shape, lambda b: (0, 0)) for w in w_arrays]
    out_specs = (
        pl.BlockSpec((tb, out_p), lambda b: (b, 0)),
        pl.BlockSpec((tb, in_p), lambda b: (b, 0)),
    )
    out_shape = (
        jax.ShapeDtypeStruct((batch_p, out_p), jnp.float32),
        jax.ShapeDtypeStruct((batch_p, in_p), jnp.float32),
    )

    # --- VMEM budget ---
    # Pallas double-buffers every BlockSpec'd input even with a constant
    # index_map, so resident weights are counted TWICE.  Cap is derived from
    # the actual chip generation (96 MiB on 128 MiB parts, 48 MiB on v7x).
    f32_sz = 4
    cdt_sz = jnp.dtype(compute_dtype).itemsize
    weight_bytes = sum(int(w.size) * int(w.dtype.itemsize) for w in w_arrays)
    needed = (
        2 * weight_bytes                              # resident weights, double-buffered
        + 2 * tb * in_p * cdt_sz                      # streamed x tiles
        + 2 * tb * (out_p + in_p) * f32_sz            # streamed enc/dec output tiles
        + 2 * tb * max(h1_p, h2_p) * f32_sz           # in-kernel hidden intermediates
    )
    vmem_limit = int(min(max(needed + (8 << 20), 32 << 20), _vmem_cap_bytes()))

    # --- Cost estimate for the 6 GEMMs ---
    flops_per_row = 2 * (in_p * h1_p + h1_p * h2_p + h2_p * out_p +
                         out_p * h2_p + h2_p * h1_p + h1_p * in_p)
    flops = batch_p * flops_per_row
    bytes_accessed = (int(x_p.size) * cdt_sz + weight_bytes
                      + batch_p * (out_p + in_p) * f32_sz)

    enc_p, dec_p = pl.pallas_call(
        ae_kernel,
        grid=grid,
        in_specs=[x_spec] + w_specs,
        out_specs=out_specs,
        out_shape=out_shape,
        compiler_params=pltpu.CompilerParams(
            dimension_semantics=("parallel",),
            vmem_limit_bytes=vmem_limit,
        ),
        cost_estimate=pl.CostEstimate(
            flops=int(flops),
            transcendentals=0,
            bytes_accessed=int(bytes_accessed),
        ),
    )(x_p, *w_arrays)

    return enc_p[:batch, :out_dim], dec_p[:batch, :in_dim]


# -----------------------------------------------------------------------------
# Param init (PyTorch nn.Linear-style) and reference
# -----------------------------------------------------------------------------
def init_linear(key, fan_in, fan_out):
    """U(-1/sqrt(fan_in), +1/sqrt(fan_in)); weight pre-transposed as (in, out)."""
    kw, kb = jax.random.split(key)
    bound = 1.0 / jnp.sqrt(jnp.float32(fan_in))
    w = jax.random.uniform(kw, (fan_in, fan_out), jnp.float32, -bound, bound)
    b = jax.random.uniform(kb, (1, fan_out), jnp.float32, -bound, bound)
    return w, b


def init_ae_params(key, in_dim, hidden_dim1, hidden_dim2, out_dim):
    keys = jax.random.split(key, 6)
    # Encoder: in_dim -> hidden1 -> hidden2 -> out_dim
    ew1, eb1 = init_linear(keys[0], in_dim, hidden_dim1)
    ew2, eb2 = init_linear(keys[1], hidden_dim1, hidden_dim2)
    ew3, eb3 = init_linear(keys[2], hidden_dim2, out_dim)
    # Decoder: out_dim -> hidden2 -> hidden1 -> in_dim
    dw1, db1 = init_linear(keys[3], out_dim, hidden_dim2)
    dw2, db2 = init_linear(keys[4], hidden_dim2, hidden_dim1)
    dw3, db3 = init_linear(keys[5], hidden_dim1, in_dim)
    return (ew1, eb1, ew2, eb2, ew3, eb3, dw1, db1, dw2, db2, dw3, db3)


def reference_forward(x, params, compute_dtype=jnp.float32):
    """Pure-JAX reference with the same operand-cast scheme as the kernel."""
    ew1, eb1, ew2, eb2, ew3, eb3, dw1, db1, dw2, db2, dw3, db3 = params

    def lin(h, w, b):
        return jnp.dot(h.astype(compute_dtype), w.astype(compute_dtype),
                       preferred_element_type=jnp.float32) + b

    h = jnp.maximum(lin(x, ew1, eb1), 0.0)
    h = jnp.maximum(lin(h, ew2, eb2), 0.0)
    enc = lin(h, ew3, eb3)
    h = jnp.maximum(lin(enc, dw1, db1), 0.0)
    h = jnp.maximum(lin(h, dw2, db2), 0.0)
    dec = lin(h, dw3, db3)
    return enc, dec


# TODO(synk): fit()/EarlyStopping/Adam training loop and checkpoint I/O are
# host-side training utilities, not part of the forward pass kernel.

if __name__ == "__main__":
    # Small shapes consistent with the module's flat-vector MLP autoencoder.
    # batch=50 exercises row padding and a 2-program grid (v7x megacore path).
    batch = 50
    in_dim = 16
    hidden_dim1 = 32
    hidden_dim2 = 32
    out_dim = 8

    key = jax.random.PRNGKey(0)
    kx, kp = jax.random.split(key)
    x = jax.random.normal(kx, (batch, in_dim), jnp.float32)
    params = init_ae_params(kp, in_dim, hidden_dim1, hidden_dim2, out_dim)

    # Pad/cast weights once (bf16 operands, f32 accumulation).
    padded_params = prepare_params(params, compute_dtype=jnp.bfloat16)

    enc, dec = ae_forward(x, padded_params, out_dim=out_dim)
    enc = jax.block_until_ready(enc)
    dec = jax.block_until_ready(dec)

    assert enc.shape == (batch, out_dim)
    assert dec.shape == (batch, in_dim)

    # Reference with the identical bf16-operand / f32-accumulate scheme.
    enc_ref, dec_ref = reference_forward(x, params, compute_dtype=jnp.bfloat16)
    assert jnp.allclose(enc, enc_ref, atol=1e-3, rtol=1e-3)
    assert jnp.allclose(dec, dec_ref, atol=1e-3, rtol=1e-3)

    # Loose sanity check against the pure-f32 reference (bf16 quantization err).
    enc_f32, dec_f32 = reference_forward(x, params, compute_dtype=jnp.float32)
    assert jnp.allclose(enc, enc_f32, atol=5e-2, rtol=5e-2)
    assert jnp.allclose(dec, dec_f32, atol=5e-2, rtol=5e-2)

    print("KERNEL_OK")
</pallas_src>

<mosaic_0001>
module attributes {stable_mosaic.version = 11 : i64} {
  func.func @ae_kernel(%arg0: i32, %arg1: memref<32x128xbf16, #tpu.memory_space<vmem>>, %arg2: memref<128x128xbf16, #tpu.memory_space<vmem>>, %arg3: memref<1x128xf32, #tpu.memory_space<vmem>>, %arg4: memref<128x128xbf16, #tpu.memory_space<vmem>>, %arg5: memref<1x128xf32, #tpu.memory_space<vmem>>, %arg6: memref<128x128xbf16, #tpu.memory_space<vmem>>, %arg7: memref<1x128xf32, #tpu.memory_space<vmem>>, %arg8: memref<128x128xbf16, #tpu.memory_space<vmem>>, %arg9: memref<1x128xf32, #tpu.memory_space<vmem>>, %arg10: memref<128x128xbf16, #tpu.memory_space<vmem>>, %arg11: memref<1x128xf32, #tpu.memory_space<vmem>>, %arg12: memref<128x128xbf16, #tpu.memory_space<vmem>>, %arg13: memref<1x128xf32, #tpu.memory_space<vmem>>, %arg14: memref<32x128xf32, #tpu.memory_space<vmem>>, %arg15: memref<32x128xf32, #tpu.memory_space<vmem>>) attributes {dimension_semantics = [#tpu.dimension_semantics<parallel>], iteration_bounds = array<i64: 2>, scalar_prefetch = 0 : i64, scratch_operands = 0 : i64, tpu.core_type = #tpu.core_type<tc>, window_params = [{transform_indices = @transform_0, window_bounds = array<i64: 32, 128>}, {pipeline_mode = #tpu.pipeline_mode<synchronous>, transform_indices = @transform_1, window_bounds = array<i64: 128, 128>}, {pipeline_mode = #tpu.pipeline_mode<synchronous>, transform_indices = @transform_2, window_bounds = array<i64: 1, 128>}, {pipeline_mode = #tpu.pipeline_mode<synchronous>, transform_indices = @transform_3, window_bounds = array<i64: 128, 128>}, {pipeline_mode = #tpu.pipeline_mode<synchronous>, transform_indices = @transform_4, window_bounds = array<i64: 1, 128>}, {pipeline_mode = #tpu.pipeline_mode<synchronous>, transform_indices = @transform_5, window_bounds = array<i64: 128, 128>}, {pipeline_mode = #tpu.pipeline_mode<synchronous>, transform_indices = @transform_6, window_bounds = array<i64: 1, 128>}, {pipeline_mode = #tpu.pipeline_mode<synchronous>, transform_indices = @transform_7, window_bounds = array<i64: 128, 128>}, {pipeline_mode = #tpu.pipeline_mode<synchronous>, transform_indices = @transform_8, window_bounds = array<i64: 1, 128>}, {pipeline_mode = #tpu.pipeline_mode<synchronous>, transform_indices = @transform_9, window_bounds = array<i64: 128, 128>}, {pipeline_mode = #tpu.pipeline_mode<synchronous>, transform_indices = @transform_10, window_bounds = array<i64: 1, 128>}, {pipeline_mode = #tpu.pipeline_mode<synchronous>, transform_indices = @transform_11, window_bounds = array<i64: 128, 128>}, {pipeline_mode = #tpu.pipeline_mode<synchronous>, transform_indices = @transform_12, window_bounds = array<i64: 1, 128>}, {transform_indices = @transform_13, window_bounds = array<i64: 32, 128>}, {transform_indices = @transform_14, window_bounds = array<i64: 32, 128>}]} {
    %c0 = arith.constant 0 : index
    %c0_0 = arith.constant 0 : index
    %0 = vector.load %arg1[%c0, %c0_0] : memref<32x128xbf16, #tpu.memory_space<vmem>>, vector<32x128xbf16>
    %c0_1 = arith.constant 0 : index
    %c0_2 = arith.constant 0 : index
    %1 = vector.load %arg2[%c0_1, %c0_2] : memref<128x128xbf16, #tpu.memory_space<vmem>>, vector<128x128xbf16>
    %cst = arith.constant dense<0.000000e+00> : vector<32x128xf32>
    %2 = tpu.matmul %0, %1, %cst {dimension_numbers = #tpu.dot_dimension_numbers<[1], [0], [0], [1], [0, 0, 1, 1], [], []>} : vector<32x128xbf16>, vector<128x128xbf16>, vector<32x128xf32> -> vector<32x128xf32>
    %c0_3 = arith.constant 0 : index
    %c0_4 = arith.constant 0 : index
    %3 = vector.load %arg3[%c0_3, %c0_4] : memref<1x128xf32, #tpu.memory_space<vmem>>, vector<1x128xf32>
    %4 = vector.broadcast %3 : vector<1x128xf32> to vector<32x128xf32>
    %5 = arith.addf %2, %4 : vector<32x128xf32>
    %cst_5 = arith.constant 0.000000e+00 : f32
    %6 = vector.broadcast %cst_5 : f32 to vector<32x128xf32>
    %7 = arith.maximumf %5, %6 : vector<32x128xf32>
    %8 = arith.truncf %7 : vector<32x128xf32> to vector<32x128xbf16>
    %c0_6 = arith.constant 0 : index
    %c0_7 = arith.constant 0 : index
    %9 = vector.load %arg4[%c0_6, %c0_7] : memref<128x128xbf16, #tpu.memory_space<vmem>>, vector<128x128xbf16>
    %cst_8 = arith.constant dense<0.000000e+00> : vector<32x128xf32>
    %10 = tpu.matmul %8, %9, %cst_8 {dimension_numbers = #tpu.dot_dimension_numbers<[1], [0], [0], [1], [0, 0, 1, 1], [], []>} : vector<32x128xbf16>, vector<128x128xbf16>, vector<32x128xf32> -> vector<32x128xf32>
    %c0_9 = arith.constant 0 : index
    %c0_10 = arith.constant 0 : index
    %11 = vector.load %arg5[%c0_9, %c0_10] : memref<1x128xf32, #tpu.memory_space<vmem>>, vector<1x128xf32>
    %12 = vector.broadcast %11 : vector<1x128xf32> to vector<32x128xf32>
    %13 = arith.addf %10, %12 : vector<32x128xf32>
    %cst_11 = arith.constant 0.000000e+00 : f32
    %14 = vector.broadcast %cst_11 : f32 to vector<32x128xf32>
    %15 = arith.maximumf %13, %14 : vector<32x128xf32>
    %16 = arith.truncf %15 : vector<32x128xf32> to vector<32x128xbf16>
    %c0_12 = arith.constant 0 : index
    %c0_13 = arith.constant 0 : index
    %17 = vector.load %arg6[%c0_12, %c0_13] : memref<128x128xbf16, #tpu.memory_space<vmem>>, vector<128x128xbf16>
    %cst_14 = arith.constant dense<0.000000e+00> : vector<32x128xf32>
    %18 = tpu.matmul %16, %17, %cst_14 {dimension_numbers = #tpu.dot_dimension_numbers<[1], [0], [0], [1], [0, 0, 1, 1], [], []>} : vector<32x128xbf16>, vector<128x128xbf16>, vector<32x128xf32> -> vector<32x128xf32>
    %c0_15 = arith.constant 0 : index
    %c0_16 = arith.constant 0 : index
    %19 = vector.load %arg7[%c0_15, %c0_16] : memref<1x128xf32, #tpu.memory_space<vmem>>, vector<1x128xf32>
    %20 = vector.broadcast %19 : vector<1x128xf32> to vector<32x128xf32>
    %21 = arith.addf %18, %20 : vector<32x128xf32>
    %c0_17 = arith.constant 0 : index
    %c0_18 = arith.constant 0 : index
    %22 = vector.load %arg14[%c0_17, %c0_18] : memref<32x128xf32, #tpu.memory_space<vmem>>, vector<32x128xf32>
    tpu.vector_store %arg14[%c0_17, %c0_18], %21 {strides = array<i32>} : memref<32x128xf32, #tpu.memory_space<vmem>>, vector<32x128xf32>,
    %23 = arith.truncf %21 : vector<32x128xf32> to vector<32x128xbf16>
    %c0_19 = arith.constant 0 : index
    %c0_20 = arith.constant 0 : index
    %24 = vector.load %arg8[%c0_19, %c0_20] : memref<128x128xbf16, #tpu.memory_space<vmem>>, vector<128x128xbf16>
    %cst_21 = arith.constant dense<0.000000e+00> : vector<32x128xf32>
    %25 = tpu.matmul %23, %24, %cst_21 {dimension_numbers = #tpu.dot_dimension_numbers<[1], [0], [0], [1], [0, 0, 1, 1], [], []>} : vector<32x128xbf16>, vector<128x128xbf16>, vector<32x128xf32> -> vector<32x128xf32>
    %c0_22 = arith.constant 0 : index
    %c0_23 = arith.constant 0 : index
    %26 = vector.load %arg9[%c0_22, %c0_23] : memref<1x128xf32, #tpu.memory_space<vmem>>, vector<1x128xf32>
    %27 = vector.broadcast %26 : vector<1x128xf32> to vector<32x128xf32>
    %28 = arith.addf %25, %27 : vector<32x128xf32>
    %cst_24 = arith.constant 0.000000e+00 : f32
    %29 = vector.broadcast %cst_24 : f32 to vector<32x128xf32>
    %30 = arith.maximumf %28, %29 : vector<32x128xf32>
    %31 = arith.truncf %30 : vector<32x128xf32> to vector<32x128xbf16>
    %c0_25 = arith.constant 0 : index
    %c0_26 = arith.constant 0 : index
    %32 = vector.load %arg10[%c0_25, %c0_26] : memref<128x128xbf16, #tpu.memory_space<vmem>>, vector<128x128xbf16>
    %cst_27 = arith.constant dense<0.000000e+00> : vector<32x128xf32>
    %33 = tpu.matmul %31, %32, %cst_27 {dimension_numbers = #tpu.dot_dimension_numbers<[1], [0], [0], [1], [0, 0, 1, 1], [], []>} : vector<32x128xbf16>, vector<128x128xbf16>, vector<32x128xf32> -> vector<32x128xf32>
    %c0_28 = arith.constant 0 : index
    %c0_29 = arith.constant 0 : index
    %34 = vector.load %arg11[%c0_28, %c0_29] : memref<1x128xf32, #tpu.memory_space<vmem>>, vector<1x128xf32>
    %35 = vector.broadcast %34 : vector<1x128xf32> to vector<32x128xf32>
    %36 = arith.addf %33, %35 : vector<32x128xf32>
    %cst_30 = arith.constant 0.000000e+00 : f32
    %37 = vector.broadcast %cst_30 : f32 to vector<32x128xf32>
    %38 = arith.maximumf %36, %37 : vector<32x128xf32>
    %39 = arith.truncf %38 : vector<32x128xf32> to vector<32x128xbf16>
    %c0_31 = arith.constant 0 : index
    %c0_32 = arith.constant 0 : index
    %40 = vector.load %arg12[%c0_31, %c0_32] : memref<128x128xbf16, #tpu.memory_space<vmem>>, vector<128x128xbf16>
    %cst_33 = arith.constant dense<0.000000e+00> : vector<32x128xf32>
    %41 = tpu.matmul %39, %40, %cst_33 {dimension_numbers = #tpu.dot_dimension_numbers<[1], [0], [0], [1], [0, 0, 1, 1], [], []>} : vector<32x128xbf16>, vector<128x128xbf16>, vector<32x128xf32> -> vector<32x128xf32>
    %c0_34 = arith.constant 0 : index
    %c0_35 = arith.constant 0 : index
    %42 = vector.load %arg13[%c0_34, %c0_35] : memref<1x128xf32, #tpu.memory_space<vmem>>, vector<1x128xf32>
    %43 = vector.broadcast %42 : vector<1x128xf32> to vector<32x128xf32>
    %44 = arith.addf %41, %43 : vector<32x128xf32>
    %c0_36 = arith.constant 0 : index
    %c0_37 = arith.constant 0 : index
    %45 = vector.load %arg15[%c0_36, %c0_37] : memref<32x128xf32, #tpu.memory_space<vmem>>, vector<32x128xf32>
    tpu.vector_store %arg15[%c0_36, %c0_37], %44 {strides = array<i32>} : memref<32x128xf32, #tpu.memory_space<vmem>>, vector<32x128xf32>,
    return
  }
  func.func @transform_0(%arg0: i32) -> (i32, i32) {
    %c0_i32 = arith.constant 0 : i32
    %c0_i32_0 = arith.constant 0 : i32
    return %arg0, %c0_i32 : i32, i32
  }
  func.func @transform_1(%arg0: i32) -> (i32, i32) {
    %c0_i32 = arith.constant 0 : i32
    %c0_i32_0 = arith.constant 0 : i32
    %c0_i32_1 = arith.constant 0 : i32
    return %c0_i32, %c0_i32_0 : i32, i32
  }
  func.func @transform_2(%arg0: i32) -> (i32, i32) {
    %c0_i32 = arith.constant 0 : i32
    %c0_i32_0 = arith.constant 0 : i32
    %c0_i32_1 = arith.constant 0 : i32
    return %c0_i32, %c0_i32_0 : i32, i32
  }
  func.func @transform_3(%arg0: i32) -> (i32, i32) {
    %c0_i32 = arith.constant 0 : i32
    %c0_i32_0 = arith.constant 0 : i32
    %c0_i32_1 = arith.constant 0 : i32
    return %c0_i32, %c0_i32_0 : i32, i32
  }
  func.func @transform_4(%arg0: i32) -> (i32, i32) {
    %c0_i32 = arith.constant 0 : i32
    %c0_i32_0 = arith.constant 0 : i32
    %c0_i32_1 = arith.constant 0 : i32
    return %c0_i32, %c0_i32_0 : i32, i32
  }
  func.func @transform_5(%arg0: i32) -> (i32, i32) {
    %c0_i32 = arith.constant 0 : i32
    %c0_i32_0 = arith.constant 0 : i32
    %c0_i32_1 = arith.constant 0 : i32
    return %c0_i32, %c0_i32_0 : i32, i32
  }
  func.func @transform_6(%arg0: i32) -> (i32, i32) {
    %c0_i32 = arith.constant 0 : i32
    %c0_i32_0 = arith.constant 0 : i32
    %c0_i32_1 = arith.constant 0 : i32
    return %c0_i32, %c0_i32_0 : i32, i32
  }
  func.func @transform_7(%arg0: i32) -> (i32, i32) {
    %c0_i32 = arith.constant 0 : i32
    %c0_i32_0 = arith.constant 0 : i32
    %c0_i32_1 = arith.constant 0 : i32
    return %c0_i32, %c0_i32_0 : i32, i32
  }
  func.func @transform_8(%arg0: i32) -> (i32, i32) {
    %c0_i32 = arith.constant 0 : i32
    %c0_i32_0 = arith.constant 0 : i32
    %c0_i32_1 = arith.constant 0 : i32
    return %c0_i32, %c0_i32_0 : i32, i32
  }
  func.func @transform_9(%arg0: i32) -> (i32, i32) {
    %c0_i32 = arith.constant 0 : i32
    %c0_i32_0 = arith.constant 0 : i32
    %c0_i32_1 = arith.constant 0 : i32
    return %c0_i32, %c0_i32_0 : i32, i32
  }
  func.func @transform_10(%arg0: i32) -> (i32, i32) {
    %c0_i32 = arith.constant 0 : i32
    %c0_i32_0 = arith.constant 0 : i32
    %c0_i32_1 = arith.constant 0 : i32
    return %c0_i32, %c0_i32_0 : i32, i32
  }
  func.func @transform_11(%arg0: i32) -> (i32, i32) {
    %c0_i32 = arith.constant 0 : i32
    %c0_i32_0 = arith.constant 0 : i32
    %c0_i32_1 = arith.constant 0 : i32
    return %c0_i32, %c0_i32_0 : i32, i32
  }
  func.func @transform_12(%arg0: i32) -> (i32, i32) {
    %c0_i32 = arith.constant 0 : i32
    %c0_i32_0 = arith.constant 0 : i32
    %c0_i32_1 = arith.constant 0 : i32
    return %c0_i32, %c0_i32_0 : i32, i32
  }
  func.func @transform_13(%arg0: i32) -> (i32, i32) {
    %c0_i32 = arith.constant 0 : i32
    %c0_i32_0 = arith.constant 0 : i32
    return %arg0, %c0_i32 : i32, i32
  }
  func.func @transform_14(%arg0: i32) -> (i32, i32) {
    %c0_i32 = arith.constant 0 : i32
    %c0_i32_0 = arith.constant 0 : i32
    return %arg0, %c0_i32 : i32, i32
  }
}

</mosaic_0001>

<llo_original>
// kernel: ae_forward.1
$region0: #{ae_forward.1}
  #allocation0 [shape = 'u32[]', space=smem, size = 0x4, offset = 0x4, fixed_abs, tag = 'smem constant byte address 0x4 - core index']
  #allocation1 [shape = 'u32[72,128]{1,0:T(1,128)}', space=vmem, size = 0x9000, scoped, tag = 'internal scratch']
  %s0 = inlined_call_operand.vmem [shape: bf16[64,128], index: 0, kind: input, shape index: {}]
  %s1 = inlined_call_operand.vmem [shape: bf16[128,128], index: 1, kind: input, shape index: {}]
  %s2 = inlined_call_operand.hbm [shape: f32[1,128], index: 2, kind: input, shape index: {}]
  %s3 = inlined_call_operand.hbm [shape: bf16[128,128], index: 3, kind: input, shape index: {}]
  %s4 = inlined_call_operand.hbm [shape: f32[1,128], index: 4, kind: input, shape index: {}]
  %s5 = inlined_call_operand.hbm [shape: bf16[128,128], index: 5, kind: input, shape index: {}]
  %s6 = inlined_call_operand.hbm [shape: f32[1,128], index: 6, kind: input, shape index: {}]
  %s7 = inlined_call_operand.hbm [shape: bf16[128,128], index: 7, kind: input, shape index: {}]
  %s8 = inlined_call_operand.hbm [shape: f32[1,128], index: 8, kind: input, shape index: {}]
  %s9 = inlined_call_operand.vmem [shape: bf16[128,128], index: 9, kind: input, shape index: {}]
  %s10 = inlined_call_operand.vmem [shape: f32[1,128], index: 10, kind: input, shape index: {}]
  %s11 = inlined_call_operand.hbm [shape: bf16[128,128], index: 11, kind: input, shape index: {}]
  %s12 = inlined_call_operand.vmem [shape: f32[1,128], index: 12, kind: input, shape index: {}]
  %s13 = inlined_call_operand.vmem [shape: f32[64,128], index: 13, kind: output, shape index: {0}]
  %s14 = inlined_call_operand.vmem [shape: f32[64,128], index: 14, kind: output, shape index: {1}]
  %15 = xla_tuple %s13, %s14
  %s16 = sld [smem:[#allocation0]]
  $region125: #{ae_forward.1} parent=0
    _
  %s18 = ssub.s32 1, %s16
  %s19 = scalar_select 0, %s18, %s16
  $region1: #{ae_forward.1} parent=0
    #allocation2 [shape = 'u8[512]{0}', space=vmem, size = 0x400, scoped, tag = 'input window, operand 2, single buffered']
    #allocation3 [shape = 's32[2]{0}', space=sflag, size = 0x8, scoped, tag = 'scoped memory for ae_forward.1']
    #allocation4 [shape = 'u8[32768]{0}', space=vmem, size = 0x8000, scoped, tag = 'input window, operand 3, single buffered']
    #allocation5 [shape = 's32[1]{0}', space=sflag, size = 0x4, scoped, tag = 'scoped memory for ae_forward.1']
    #allocation6 [shape = 'u8[512]{0}', space=vmem, size = 0x400, scoped, tag = 'input window, operand 4, single buffered']
    #allocation7 [shape = 'u8[32768]{0}', space=vmem, size = 0x8000, scoped, tag = 'input window, operand 5, single buffered']
    #allocation8 [shape = 's32[1]{0}', space=sflag, size = 0x4, scoped, tag = 'scoped memory for ae_forward.1']
    #allocation9 [shape = 'u8[512]{0}', space=vmem, size = 0x400, scoped, tag = 'input window, operand 6, single buffered']
    #allocation10 [shape = 'u8[32768]{0}', space=vmem, size = 0x8000, scoped, tag = 'input window, operand 7, single buffered']
    #allocation11 [shape = 's32[1]{0}', space=sflag, size = 0x4, scoped, tag = 'scoped memory for ae_forward.1']
    #allocation12 [shape = 'u8[512]{0}', space=vmem, size = 0x400, scoped, tag = 'input window, operand 8, single buffered']
    #allocation13 [shape = 'u8[32768]{0}', space=vmem, size = 0x8000, scoped, tag = 'input window, operand 11, single buffered']
    #allocation14 [shape = 's32[1]{0}', space=sflag, size = 0x4, scoped, tag = 'scoped memory for ae_forward.1']
    %20 = vsyncpa [#allocation3], 0
    %21 = vsyncpa [#allocation5], 0
    %22 = vsyncpa [#allocation8], 0
    %23 = vsyncpa [#allocation11], 0
    %24 = vsyncpa [#allocation14], 0
    loop: start=0, step=1, limit=4
    $region2: #{ae_forward.1} parent=1 // loop_pre_header
      _
    $region3: #{ae_forward.1} parent=1 // loop_header
      %s26 = sphi 0, %s30
      %p27 = scmp.ge.s32.totalorder %s26, 4
      %s36 = sphi 0, %s38
      %s39 = sphi 0, %s36
      %s40 = sphi 0, %s39
      %s56 = sphi 0, %s40
      %s60 = sphi 0, %s60
      %s62 = sphi 0, %s60
      %s63 = sphi 0, %s62
      %s77 = sphi 0, %s63
      %s81 = sphi 0, %s81
      %s83 = sphi 0, %s81
      %s84 = sphi 0, %s83
      %s98 = sphi 0, %s84
      %s102 = sphi 0, %s102
      %s104 = sphi 0, %s102
      %s105 = sphi 0, %s104
      %s119 = sphi 0, %s105
      %s123 = sphi 0, %s123
      %s125 = sphi 0, %s123
      %s126 = sphi 0, %s125
      %s140 = sphi 0, %s126
      %s144 = sphi 0, %s144
      %s146 = sphi 0, %s144
      %s147 = sphi 0, %s146
      %s161 = sphi 0, %s147
      %s165 = sphi 0, %s165
      %s167 = sphi 0, %s165
      %s168 = sphi 0, %s167
      %s182 = sphi 0, %s168
      %s186 = sphi 0, %s186
      %s188 = sphi 0, %s186
      %s189 = sphi 0, %s188
      %s203 = sphi 0, %s189
      %s207 = sphi 0, %s207
      %s209 = sphi 0, %s207
      %s210 = sphi 0, %s209
      %s224 = sphi 0, %s210
      %s228 = sphi 0, %s228
      %s230 = sphi 0, %s228
      %s231 = sphi 0, %s230
      %s245 = sphi 0, %s231
      %s249 = sphi 0, %s249
      %s251 = sphi 0, %s249
      %s252 = sphi 0, %s251
      %s266 = sphi 0, %s252
      %s270 = sphi 0, %s270
      %s272 = sphi 0, %s270
      %s273 = sphi 0, %s272
      %s287 = sphi 0, %s273
      %s291 = sphi 0, %s291
      %s293 = sphi 0, %s291
      %s294 = sphi 0, %s293
      %s308 = sphi 0, %s294
      %s314 = sphi 0, %s316
      %s317 = sphi 0, %s314
      %s318 = sphi 0, %s317
      %s334 = sphi 0, %s318
      %s340 = sphi 0, %s342
      %s343 = sphi 0, %s340
      %s344 = sphi 0, %s343
      %s360 = sphi 0, %s344
    $region4: #{ae_forward.1} parent=1 // loop_header_branch
      %29 = sbr.rel (%p27) target = $region8
    $region5: #{ae_forward.1} parent=1 // loop_body
      %s31 = ssub.s32 %s26, 1
      %s32 = ssub.s32 %s26, 2
      %s33 = sadd.s32 %s26, 1
      %s34 = ssub.s32 %s26, %s33
      %p35 = scmp.eq.s32.totalorder %s34, 0
      %s37 = sadd.s32 %s36, 1
      %s38 = scalar_select %p35, %s36, %s37
      %p41 = pneg %p35
      %p42 = scmp.eq.s32.totalorder %s26, 1
      %p43 = por %p41, %p42
      %p44 = scmp.ne.s32.totalorder %s36, %s39
      %p45 = scmp.eq.s32.totalorder %s26, 0
      %p46 = por %p44, %p45
      %p47 = scmp.ne.s32.totalorder %s36, %s39
      %p48 = scmp.eq.s32.totalorder %s31, 1
      %p49 = por %p47, %p48
      %p50 = scmp.ne.s32.totalorder %s39, %s40
      %p51 = scmp.eq.s32.totalorder %s31, 0
      %p52 = por %p50, %p51
      %p53 = scmp.ne.s32.totalorder %s39, %s40
      %p54 = scmp.eq.s32.totalorder %s32, 1
      %p55 = por %p53, %p54
      %p57 = scmp.ne.s32.totalorder %s40, %s56
      %p58 = scmp.eq.s32.totalorder %s32, 0
      %p59 = por %p57, %p58
      %s61 = sadd.s32 %s60, 1
      %p64 = scmp.eq.s32.totalorder %s26, 1
      %p65 = scmp.ne.s32.totalorder %s60, %s62
      %p66 = scmp.eq.s32.totalorder %s26, 0
      %p67 = por %p65, %p66
      %p68 = scmp.ne.s32.totalorder %s60, %s62
      %p69 = scmp.eq.s32.totalorder %s31, 1
      %p70 = por %p68, %p69
      %p71 = scmp.ne.s32.totalorder %s62, %s63
      %p72 = scmp.eq.s32.totalorder %s31, 0
      %p73 = por %p71, %p72
      %p74 = scmp.ne.s32.totalorder %s62, %s63
      %p75 = scmp.eq.s32.totalorder %s32, 1
      %p76 = por %p74, %p75
      %p78 = scmp.ne.s32.totalorder %s63, %s77
      %p79 = scmp.eq.s32.totalorder %s32, 0
      %p80 = por %p78, %p79
      %s82 = sadd.s32 %s81, 1
      %p85 = scmp.eq.s32.totalorder %s26, 1
      %p86 = scmp.ne.s32.totalorder %s81, %s83
      %p87 = scmp.eq.s32.totalorder %s26, 0
      %p88 = por %p86, %p87
      %p89 = scmp.ne.s32.totalorder %s81, %s83
      %p90 = scmp.eq.s32.totalorder %s31, 1
      %p91 = por %p89, %p90
      %p92 = scmp.ne.s32.totalorder %s83, %s84
      %p93 = scmp.eq.s32.totalorder %s31, 0
      %p94 = por %p92, %p93
      %p95 = scmp.ne.s32.totalorder %s83, %s84
      %p96 = scmp.eq.s32.totalorder %s32, 1
      %p97 = por %p95, %p96
      %p99 = scmp.ne.s32.totalorder %s84, %s98
      %p100 = scmp.eq.s32.totalorder %s32, 0
      %p101 = por %p99, %p100
      %s103 = sadd.s32 %s102, 1
      %p106 = scmp.eq.s32.totalorder %s26, 1
      %p107 = scmp.ne.s32.totalorder %s102, %s104
      %p108 = scmp.eq.s32.totalorder %s26, 0
      %p109 = por %p107, %p108
      %p110 = scmp.ne.s32.totalorder %s102, %s104
      %p111 = scmp.eq.s32.totalorder %s31, 1
      %p112 = por %p110, %p111
      %p113 = scmp.ne.s32.totalorder %s104, %s105
      %p114 = scmp.eq.s32.totalorder %s31, 0
      %p115 = por %p113, %p114
      %p116 = scmp.ne.s32.totalorder %s104, %s105
      %p117 = scmp.eq.s32.totalorder %s32, 1
      %p118 = por %p116, %p117
      %p120 = scmp.ne.s32.totalorder %s105, %s119
      %p121 = scmp.eq.s32.totalorder %s32, 0
      %p122 = por %p120, %p121
      %s124 = sadd.s32 %s123, 1
      %p127 = scmp.eq.s32.totalorder %s26, 1
      %p128 = scmp.ne.s32.totalorder %s123, %s125
      %p129 = scmp.eq.s32.totalorder %s26, 0
      %p130 = por %p128, %p129
      %p131 = scmp.ne.s32.totalorder %s123, %s125
      %p132 = scmp.eq.s32.totalorder %s31, 1
      %p133 = por %p131, %p132
      %p134 = scmp.ne.s32.totalorder %s125, %s126
      %p135 = scmp.eq.s32.totalorder %s31, 0
      %p136 = por %p134, %p135
      %p137 = scmp.ne.s32.totalorder %s125, %s126
      %p138 = scmp.eq.s32.totalorder %s32, 1
      %p139 = por %p137, %p138
      %p141 = scmp.ne.s32.totalorder %s126, %s140
      %p142 = scmp.eq.s32.totalorder %s32, 0
      %p143 = por %p141, %p142
      %s145 = sadd.s32 %s144, 1
      %p148 = scmp.eq.s32.totalorder %s26, 1
      %p149 = scmp.ne.s32.totalorder %s144, %s146
      %p150 = scmp.eq.s32.totalorder %s26, 0
      %p151 = por %p149, %p150
      %p152 = scmp.ne.s32.totalorder %s144, %s146
      %p153 = scmp.eq.s32.totalorder %s31, 1
      %p154 = por %p152, %p153
      %p155 = scmp.ne.s32.totalorder %s146, %s147
      %p156 = scmp.eq.s32.totalorder %s31, 0
      %p157 = por %p155, %p156
      %p158 = scmp.ne.s32.totalorder %s146, %s147
      %p159 = scmp.eq.s32.totalorder %s32, 1
      %p160 = por %p158, %p159
      %p162 = scmp.ne.s32.totalorder %s147, %s161
      %p163 = scmp.eq.s32.totalorder %s32, 0
      %p164 = por %p162, %p163
      %s166 = sadd.s32 %s165, 1
      %p169 = scmp.eq.s32.totalorder %s26, 1
      %p170 = scmp.ne.s32.totalorder %s165, %s167
      %p171 = scmp.eq.s32.totalorder %s26, 0
      %p172 = por %p170, %p171
      %p173 = scmp.ne.s32.totalorder %s165, %s167
      %p174 = scmp.eq.s32.totalorder %s31, 1
      %p175 = por %p173, %p174
      %p176 = scmp.ne.s32.totalorder %s167, %s168
      %p177 = scmp.eq.s32.totalorder %s31, 0
      %p178 = por %p176, %p177
      %p179 = scmp.ne.s32.totalorder %s167, %s168
      %p180 = scmp.eq.s32.totalorder %s32, 1
      %p181 = por %p179, %p180
      %p183 = scmp.ne.s32.totalorder %s168, %s182
      %p184 = scmp.eq.s32.totalorder %s32, 0
      %p185 = por %p183, %p184
      %s187 = sadd.s32 %s186, 1
      %p190 = scmp.eq.s32.totalorder %s26, 1
      %p191 = scmp.ne.s32.totalorder %s186, %s188
      %p192 = scmp.eq.s32.totalorder %s26, 0
      %p193 = por %p191, %p192
      %p194 = scmp.ne.s32.totalorder %s186, %s188
      %p195 = scmp.eq.s32.totalorder %s31, 1
      %p196 = por %p194, %p195
      %p197 = scmp.ne.s32.totalorder %s188, %s189
      %p198 = scmp.eq.s32.totalorder %s31, 0
      %p199 = por %p197, %p198
      %p200 = scmp.ne.s32.totalorder %s188, %s189
      %p201 = scmp.eq.s32.totalorder %s32, 1
      %p202 = por %p200, %p201
      %p204 = scmp.ne.s32.totalorder %s189, %s203
      %p205 = scmp.eq.s32.totalorder %s32, 0
      %p206 = por %p204, %p205
      %s208 = sadd.s32 %s207, 1
      %p211 = scmp.eq.s32.totalorder %s26, 1
      %p212 = scmp.ne.s32.totalorder %s207, %s209
      %p213 = scmp.eq.s32.totalorder %s26, 0
      %p214 = por %p212, %p213
      %p215 = scmp.ne.s32.totalorder %s207, %s209
      %p216 = scmp.eq.s32.totalorder %s31, 1
      %p217 = por %p215, %p216
      %p218 = scmp.ne.s32.totalorder %s209, %s210
      %p219 = scmp.eq.s32.totalorder %s31, 0
      %p220 = por %p218, %p219
      %p221 = scmp.ne.s32.totalorder %s209, %s210
      %p222 = scmp.eq.s32.totalorder %s32, 1
      %p223 = por %p221, %p222
      %p225 = scmp.ne.s32.totalorder %s210, %s224
      %p226 = scmp.eq.s32.totalorder %s32, 0
      %p227 = por %p225, %p226
      %s229 = sadd.s32 %s228, 1
      %p232 = scmp.eq.s32.totalorder %s26, 1
      %p233 = scmp.ne.s32.totalorder %s228, %s230
      %p234 = scmp.eq.s32.totalorder %s26, 0
      %p235 = por %p233, %p234
      %p236 = scmp.ne.s32.totalorder %s228, %s230
      %p237 = scmp.eq.s32.totalorder %s31, 1
      %p238 = por %p236, %p237
      %p239 = scmp.ne.s32.totalorder %s230, %s231
      %p240 = scmp.eq.s32.totalorder %s31, 0
      %p241 = por %p239, %p240
      %p242 = scmp.ne.s32.totalorder %s230, %s231
      %p243 = scmp.eq.s32.totalorder %s32, 1
      %p244 = por %p242, %p243
      %p246 = scmp.ne.s32.totalorder %s231, %s245
      %p247 = scmp.eq.s32.totalorder %s32, 0
      %p248 = por %p246, %p247
      %s250 = sadd.s32 %s249, 1
      %p253 = scmp.eq.s32.totalorder %s26, 1
      %p254 = scmp.ne.s32.totalorder %s249, %s251
      %p255 = scmp.eq.s32.totalorder %s26, 0
      %p256 = por %p254, %p255
      %p257 = scmp.ne.s32.totalorder %s249, %s251
      %p258 = scmp.eq.s32.totalorder %s31, 1
      %p259 = por %p257, %p258
      %p260 = scmp.ne.s32.totalorder %s251, %s252
      %p261 = scmp.eq.s32.totalorder %s31, 0
      %p262 = por %p260, %p261
      %p263 = scmp.ne.s32.totalorder %s251, %s252
      %p264 = scmp.eq.s32.totalorder %s32, 1
      %p265 = por %p263, %p264
      %p267 = scmp.ne.s32.totalorder %s252, %s266
      %p268 = scmp.eq.s32.totalorder %s32, 0
      %p269 = por %p267, %p268
      %s271 = sadd.s32 %s270, 1
      %p274 = scmp.eq.s32.totalorder %s26, 1
      %p275 = scmp.ne.s32.totalorder %s270, %s272
      %p276 = scmp.eq.s32.totalorder %s26, 0
      %p277 = por %p275, %p276
      %p278 = scmp.ne.s32.totalorder %s270, %s272
      %p279 = scmp.eq.s32.totalorder %s31, 1
      %p280 = por %p278, %p279
      %p281 = scmp.ne.s32.totalorder %s272, %s273
      %p282 = scmp.eq.s32.totalorder %s31, 0
      %p283 = por %p281, %p282
      %p284 = scmp.ne.s32.totalorder %s272, %s273
      %p285 = scmp.eq.s32.totalorder %s32, 1
      %p286 = por %p284, %p285
      %p288 = scmp.ne.s32.totalorder %s273, %s287
      %p289 = scmp.eq.s32.totalorder %s32, 0
      %p290 = por %p288, %p289
      %s292 = sadd.s32 %s291, 1
      %p295 = scmp.eq.s32.totalorder %s26, 1
      %p296 = scmp.ne.s32.totalorder %s291, %s293
      %p297 = scmp.eq.s32.totalorder %s26, 0
      %p298 = por %p296, %p297
      %p299 = scmp.ne.s32.totalorder %s291, %s293
      %p300 = scmp.eq.s32.totalorder %s31, 1
      %p301 = por %p299, %p300
      %p302 = scmp.ne.s32.totalorder %s293, %s294
      %p303 = scmp.eq.s32.totalorder %s31, 0
      %p304 = por %p302, %p303
      %p305 = scmp.ne.s32.totalorder %s293, %s294
      %p306 = scmp.eq.s32.totalorder %s32, 1
      %p307 = por %p305, %p306
      %p309 = scmp.ne.s32.totalorder %s294, %s308
      %p310 = scmp.eq.s32.totalorder %s32, 0
      %p311 = por %p309, %p310
      %s312 = ssub.s32 %s26, %s33
      %p313 = scmp.eq.s32.totalorder %s312, 0
      %s315 = sadd.s32 %s314, 1
      %s316 = scalar_select %p313, %s314, %s315
      %p319 = pneg %p313
      %p320 = scmp.eq.s32.totalorder %s26, 1
      %p321 = por %p319, %p320
      %p322 = scmp.ne.s32.totalorder %s314, %s317
      %p323 = scmp.eq.s32.totalorder %s26, 0
      %p324 = por %p322, %p323
      %p325 = scmp.ne.s32.totalorder %s314, %s317
      %p326 = scmp.eq.s32.totalorder %s31, 1
      %p327 = por %p325, %p326
      %p328 = scmp.ne.s32.totalorder %s317, %s318
      %p329 = scmp.eq.s32.totalorder %s31, 0
      %p330 = por %p328, %p329
      %p331 = scmp.ne.s32.totalorder %s317, %s318
      %p332 = scmp.eq.s32.totalorder %s32, 1
      %p333 = por %p331, %p332
      %p335 = scmp.ne.s32.totalorder %s318, %s334
      %p336 = scmp.eq.s32.totalorder %s32, 0
      %p337 = por %p335, %p336
      %s338 = ssub.s32 %s26, %s33
      %p339 = scmp.eq.s32.totalorder %s338, 0
      %s341 = sadd.s32 %s340, 1
      %s342 = scalar_select %p339, %s340, %s341
      %p345 = pneg %p339
      %p346 = scmp.eq.s32.totalorder %s26, 1
      %p347 = por %p345, %p346
      %p348 = scmp.ne.s32.totalorder %s340, %s343
      %p349 = scmp.eq.s32.totalorder %s26, 0
      %p350 = por %p348, %p349
      %p351 = scmp.ne.s32.totalorder %s340, %s343
      %p352 = scmp.eq.s32.totalorder %s31, 1
      %p353 = por %p351, %p352
      %p354 = scmp.ne.s32.totalorder %s343, %s344
      %p355 = scmp.eq.s32.totalorder %s31, 0
      %p356 = por %p354, %p355
      %p357 = scmp.ne.s32.totalorder %s343, %s344
      %p358 = scmp.eq.s32.totalorder %s32, 1
      %p359 = por %p357, %p358
      %p361 = scmp.ne.s32.totalorder %s344, %s360
      %p362 = scmp.eq.s32.totalorder %s32, 0
      %p363 = por %p361, %p362
      %p364 = scmp.le.s32.totalorder 1, %s26
      %p365 = scmp.lt.s32.totalorder %s26, 3
      %p366 = pnand %p364, %p365
      %p367 = pneg %p366
      // Predicated region
      $region9: #{ae_forward.1} parent=5 // pred_check
        _
      $region10: #{ae_forward.1} parent=5 // pred_check_branch
        %369 = sbr.rel (%p366) target = $region12
      $region11: #{ae_forward.1} parent=5 // pred_region
        %s370 = ssub.s32 %s26, 1
        // Predicated region
        $region13: #{ae_forward.1} parent=11 // pred_check
          %p371 = pneg %p73
        $region14: #{ae_forward.1} parent=11 // pred_check_branch
          %373 = sbr.rel (%p371) target = $region16
        $region15: #{ae_forward.1} parent=11 // pred_region
          _
        $region16: #{ae_forward.1} parent=11 // pred_fallthru
          _
        // Predicated region
        $region17: #{ae_forward.1} parent=11 // pred_check
          %p374 = pneg %p94
        $region18: #{ae_forward.1} parent=11 // pred_check_branch
          %376 = sbr.rel (%p374) target = $region20
        $region19: #{ae_forward.1} parent=11 // pred_region
          %378 = vsyncadd [#allocation3], 0
          %s380 = sshll.u32 %s2, 4
          %s381 = int_to_ptr.hbm [resolvable:$true] %s380
          %s382 = sshll.u32 [#allocation2], 4
          %s383 = int_to_ptr.vmem [resolvable:$true] %s382
          %385 = dma.hbm_to_vmem [thread:$0]  %s381, 16, %s383, [#allocation3]
        $region20: #{ae_forward.1} parent=11 // pred_fallthru
          _
        // Predicated region
        $region21: #{ae_forward.1} parent=11 // pred_check
          %p386 = pneg %p115
        $region22: #{ae_forward.1} parent=11 // pred_check_branch
          %388 = sbr.rel (%p386) target = $region24
        $region23: #{ae_forward.1} parent=11 // pred_region
          %390 = vsyncadd [#allocation5], 0
          %s391 = sshll.u32 %s3, 4
          %s392 = int_to_ptr.hbm [resolvable:$true] %s391
          %s393 = sshll.u32 [#allocation4], 4
          %s394 = int_to_ptr.vmem [resolvable:$true] %s393
          %399 = dma.hbm_to_vmem [thread:$0]  %s392, 1024, %s394, [#allocation5], 64, 64, 4
        $region24: #{ae_forward.1} parent=11 // pred_fallthru
          _
        // Predicated region
        $region25: #{ae_forward.1} parent=11 // pred_check
          %p400 = pneg %p136
        $region26: #{ae_forward.1} parent=11 // pred_check_branch
          %402 = sbr.rel (%p400) target = $region28
        $region27: #{ae_forward.1} parent=11 // pred_region
          %404 = vsyncadd [#allocation5], 0
          %s406 = sshll.u32 %s4, 4
          %s407 = int_to_ptr.hbm [resolvable:$true] %s406
          %s408 = sshll.u32 [#allocation6], 4
          %s409 = int_to_ptr.vmem [resolvable:$true] %s408
          %411 = dma.hbm_to_vmem [thread:$0]  %s407, 16, %s409, [#allocation5]
        $region28: #{ae_forward.1} parent=11 // pred_fallthru
          _
        // Predicated region
        $region29: #{ae_forward.1} parent=11 // pred_check
          %p412 = pneg %p157
        $region30: #{ae_forward.1} parent=11 // pred_check_branch
          %414 = sbr.rel (%p412) target = $region32
        $region31: #{ae_forward.1} parent=11 // pred_region
          %416 = vsyncadd [#allocation8], 0
          %s417 = sshll.u32 %s5, 4
          %s418 = int_to_ptr.hbm [resolvable:$true] %s417
          %s419 = sshll.u32 [#allocation7], 4
          %s420 = int_to_ptr.vmem [resolvable:$true] %s419
          %425 = dma.hbm_to_vmem [thread:$0]  %s418, 1024, %s420, [#allocation8], 64, 64, 4
        $region32: #{ae_forward.1} parent=11 // pred_fallthru
          _
        // Predicated region
        $region33: #{ae_forward.1} parent=11 // pred_check
          %p426 = pneg %p178
        $region34: #{ae_forward.1} parent=11 // pred_check_branch
          %428 = sbr.rel (%p426) target = $region36
        $region35: #{ae_forward.1} parent=11 // pred_region
          %430 = vsyncadd [#allocation8], 0
          %s432 = sshll.u32 %s6, 4
          %s433 = int_to_ptr.hbm [resolvable:$true] %s432
          %s434 = sshll.u32 [#allocation9], 4
          %s435 = int_to_ptr.vmem [resolvable:$true] %s434
          %437 = dma.hbm_to_vmem [thread:$0]  %s433, 16, %s435, [#allocation8]
        $region36: #{ae_forward.1} parent=11 // pred_fallthru
          _
        // Predicated region
        $region37: #{ae_forward.1} parent=11 // pred_check
          %p438 = pneg %p199
        $region38: #{ae_forward.1} parent=11 // pred_check_branch
          %440 = sbr.rel (%p438) target = $region40
        $region39: #{ae_forward.1} parent=11 // pred_region
          %442 = vsyncadd [#allocation11], 0
          %s443 = sshll.u32 %s7, 4
          %s444 = int_to_ptr.hbm [resolvable:$true] %s443
          %s445 = sshll.u32 [#allocation10], 4
          %s446 = int_to_ptr.vmem [resolvable:$true] %s445
          %451 = dma.hbm_to_vmem [thread:$0]  %s444, 1024, %s446, [#allocation11], 64, 64, 4
        $region40: #{ae_forward.1} parent=11 // pred_fallthru
          _
        // Predicated region
        $region41: #{ae_forward.1} parent=11 // pred_check
          %p452 = pneg %p220
        $region42: #{ae_forward.1} parent=11 // pred_check_branch
          %454 = sbr.rel (%p452) target = $region44
        $region43: #{ae_forward.1} parent=11 // pred_region
          %456 = vsyncadd [#allocation11], 0
          %s458 = sshll.u32 %s8, 4
          %s459 = int_to_ptr.hbm [resolvable:$true] %s458
          %s460 = sshll.u32 [#allocation12], 4
          %s461 = int_to_ptr.vmem [resolvable:$true] %s460
          %463 = dma.hbm_to_vmem [thread:$0]  %s459, 16, %s461, [#allocation11]
        $region44: #{ae_forward.1} parent=11 // pred_fallthru
          _
        // Predicated region
        $region45: #{ae_forward.1} parent=11 // pred_check
          %p464 = pneg %p241
        $region46: #{ae_forward.1} parent=11 // pred_check_branch
          %466 = sbr.rel (%p464) target = $region48
        $region47: #{ae_forward.1} parent=11 // pred_region
          _
        $region48: #{ae_forward.1} parent=11 // pred_fallthru
          _
        // Predicated region
        $region49: #{ae_forward.1} parent=11 // pred_check
          %p467 = pneg %p262
        $region50: #{ae_forward.1} parent=11 // pred_check_branch
          %469 = sbr.rel (%p467) target = $region52
        $region51: #{ae_forward.1} parent=11 // pred_region
          _
        $region52: #{ae_forward.1} parent=11 // pred_fallthru
          _
        // Predicated region
        $region53: #{ae_forward.1} parent=11 // pred_check
          %p470 = pneg %p283
        $region54: #{ae_forward.1} parent=11 // pred_check_branch
          %472 = sbr.rel (%p470) target = $region56
        $region55: #{ae_forward.1} parent=11 // pred_region
          %474 = vsyncadd [#allocation14], 0
          %s475 = sshll.u32 %s11, 4
          %s476 = int_to_ptr.hbm [resolvable:$true] %s475
          %s477 = sshll.u32 [#allocation13], 4
          %s478 = int_to_ptr.vmem [resolvable:$true] %s477
          %483 = dma.hbm_to_vmem [thread:$0]  %s476, 1024, %s478, [#allocation14], 64, 64, 4
        $region56: #{ae_forward.1} parent=11 // pred_fallthru
          _
        // Predicated region
        $region57: #{ae_forward.1} parent=11 // pred_check
          %p484 = pneg %p304
        $region58: #{ae_forward.1} parent=11 // pred_check_branch
          %486 = sbr.rel (%p484) target = $region60
        $region59: #{ae_forward.1} parent=11 // pred_region
          _
        $region60: #{ae_forward.1} parent=11 // pred_fallthru
          _
      $region12: #{ae_forward.1} parent=5 // pred_fallthru
        _
      %p487 = scmp.lt.s32.totalorder %s26, 2
      // Predicated region
      $region61: #{ae_forward.1} parent=5 // pred_check
        %p488 = pneg %p487
      $region62: #{ae_forward.1} parent=5 // pred_check_branch
        %490 = sbr.rel (%p488) target = $region64
      $region63: #{ae_forward.1} parent=5 // pred_region
        // Predicated region
        $region65: #{ae_forward.1} parent=63 // pred_check
          %p491 = pneg %p46
        $region66: #{ae_forward.1} parent=63 // pred_check_branch
          %493 = sbr.rel (%p491) target = $region68
        $region67: #{ae_forward.1} parent=63 // pred_region
          %s494 = smul.u32 4, %s26
          %p495 = scmp.lt.s32.totalorder %s494, 7
          %s496 = scalar_select %p495, %s494, 7
          %s497 = smul.addr %s496, 4
          %s498 = scalar_lea.vmem %s0, %s497
          %s499 = smul.u32 4, %s26
        $region68: #{ae_forward.1} parent=63 // pred_fallthru
          _
      $region64: #{ae_forward.1} parent=5 // pred_fallthru
        _
      %p500 = scmp.le.s32.totalorder 1, %s26
      %p501 = scmp.lt.s32.totalorder %s26, 3
      %p502 = pnand %p500, %p501
      %p503 = pneg %p502
      // Predicated region
      $region69: #{ae_forward.1} parent=5 // pred_check
        _
      $region70: #{ae_forward.1} parent=5 // pred_check_branch
        %505 = sbr.rel (%p502) target = $region72
      $region71: #{ae_forward.1} parent=5 // pred_region
        %s506 = ssub.s32 %s26, 1
        // Predicated region
        $region73: #{ae_forward.1} parent=71 // pred_check
          %p507 = pneg %p94
        $region74: #{ae_forward.1} parent=71 // pred_check_branch
          %509 = sbr.rel (%p507) target = $region76
        $region75: #{ae_forward.1} parent=71 // pred_region
          %511 = dma.done [#allocation3], 16
        $region76: #{ae_forward.1} parent=71 // pred_fallthru
          _
        // Predicated region
        $region77: #{ae_forward.1} parent=71 // pred_check
          %p512 = pneg %p115
        $region78: #{ae_forward.1} parent=71 // pred_check_branch
          %514 = sbr.rel (%p512) target = $region80
        $region79: #{ae_forward.1} parent=71 // pred_region
          %516 = dma.done [#allocation5], 1024
        $region80: #{ae_forward.1} parent=71 // pred_fallthru
          _
        // Predicated region
        $region81: #{ae_forward.1} parent=71 // pred_check
          %p517 = pneg %p136
        $region82: #{ae_forward.1} parent=71 // pred_check_branch
          %519 = sbr.rel (%p517) target = $region84
        $region83: #{ae_forward.1} parent=71 // pred_region
          %521 = dma.done [#allocation5], 16
        $region84: #{ae_forward.1} parent=71 // pred_fallthru
          _
        // Predicated region
        $region85: #{ae_forward.1} parent=71 // pred_check
          %p522 = pneg %p157
        $region86: #{ae_forward.1} parent=71 // pred_check_branch
          %524 = sbr.rel (%p522) target = $region88
        $region87: #{ae_forward.1} parent=71 // pred_region
          %526 = dma.done [#allocation8], 1024
        $region88: #{ae_forward.1} parent=71 // pred_fallthru
          _
        // Predicated region
        $region89: #{ae_forward.1} parent=71 // pred_check
          %p527 = pneg %p178
        $region90: #{ae_forward.1} parent=71 // pred_check_branch
          %529 = sbr.rel (%p527) target = $region92
        $region91: #{ae_forward.1} parent=71 // pred_region
          %531 = dma.done [#allocation8], 16
        $region92: #{ae_forward.1} parent=71 // pred_fallthru
          _
        // Predicated region
        $region93: #{ae_forward.1} parent=71 // pred_check
          %p532 = pneg %p199
        $region94: #{ae_forward.1} parent=71 // pred_check_branch
          %534 = sbr.rel (%p532) target = $region96
        $region95: #{ae_forward.1} parent=71 // pred_region
          %536 = dma.done [#allocation11], 1024
        $region96: #{ae_forward.1} parent=71 // pred_fallthru
          _
        // Predicated region
        $region97: #{ae_forward.1} parent=71 // pred_check
          %p537 = pneg %p220
        $region98: #{ae_forward.1} parent=71 // pred_check_branch
          %539 = sbr.rel (%p537) target = $region100
        $region99: #{ae_forward.1} parent=71 // pred_region
          %541 = dma.done [#allocation11], 16
        $region100: #{ae_forward.1} parent=71 // pred_fallthru
          _
        // Predicated region
        $region101: #{ae_forward.1} parent=71 // pred_check
          %p542 = pneg %p283
        $region102: #{ae_forward.1} parent=71 // pred_check_branch
          %544 = sbr.rel (%p542) target = $region104
        $region103: #{ae_forward.1} parent=71 // pred_region
          %546 = dma.done [#allocation14], 1024
        $region104: #{ae_forward.1} parent=71 // pred_fallthru
          _
        %s547 = smul.u32 4, %s31
        %p548 = scmp.lt.s32.totalorder %s547, 7
        %s549 = scalar_select %p548, %s547, 7
        %s550 = smul.addr %s549, 4
        %s551 = scalar_lea.vmem %s0, %s550
        %p552 = pneg %p52
        %p553 = pneg %p49
        %p554 = pneg %p73
        %p555 = pneg %p70
        %p556 = pneg %p94
        %p557 = pneg %p91
        %p558 = pneg %p115
        %p559 = pneg %p112
        %p560 = pneg %p136
        %p561 = pneg %p133
        %p562 = pneg %p157
        %p563 = pneg %p154
        %p564 = pneg %p178
        %p565 = pneg %p175
        %p566 = pneg %p199
        %p567 = pneg %p196
        %p568 = pneg %p220
        %p569 = pneg %p217
        %p570 = pneg %p241
        %p571 = pneg %p238
        %p572 = pneg %p262
        %p573 = pneg %p259
        %p574 = pneg %p283
        %p575 = pneg %p280
        %p576 = pneg %p304
        %p577 = pneg %p301
        %p578 = pneg %p330
        %p579 = pneg %p327
        %s580 = smul.u32 4, %s31
        %p581 = scmp.lt.s32.totalorder %s580, 7
        %s582 = scalar_select %p581, %s580, 7
        %s583 = smul.addr %s582, 8
        %s584 = scalar_lea.vmem %s13, %s583
        %p585 = pneg %p356
        %p586 = pneg %p353
        %s587 = smul.u32 4, %s31
        %p588 = scmp.lt.s32.totalorder %s587, 7
        %s589 = scalar_select %p588, %s587, 7
        %s590 = smul.addr %s589, 8
        %s591 = scalar_lea.vmem %s14, %s590
        %s592 = smul.u32 4, %s31
        %p593 = scmp.lt.s32.totalorder %s592, 7
        %s594 = scalar_select %p593, %s592, 7
        %s595 = smul.addr %s594, 4
        %s596 = scalar_lea.vmem %s0, %s595
        %s597 = smul.u32 4, %s31
        %s598 = smul.u32 4, %s31
        %p599 = scmp.lt.s32.totalorder %s598, 7
        %s600 = scalar_select %p599, %s598, 7
        %s601 = smul.addr %s600, 8
        %s602 = scalar_lea.vmem %s13, %s601
        %s603 = smul.u32 4, %s31
        %s604 = smul.u32 4, %s31
        %p605 = scmp.lt.s32.totalorder %s604, 7
        %s606 = scalar_select %p605, %s604, 7
        %s607 = smul.addr %s606, 8
        %s608 = scalar_lea.vmem %s14, %s607
        %s609 = smul.u32 4, %s31
        %v610 = vld [vmem:[%s596] sm:$0xf]
        %v611 = vld [vmem:[%s596 + $0x4] sm:$0xf]
        %v612 = vld [vmem:[%s596 + $0x8] sm:$0xf]
        %v613 = vld [vmem:[%s596 + $0xc] sm:$0xf]
        %v614 = vld [vmem:[%s1] sm:$0xf]
        %v615 = vld [vmem:[%s1 + $0x4] sm:$0xf]
        %v616 = vld [vmem:[%s1 + $0x8] sm:$0xf]
        %v617 = vld [vmem:[%s1 + $0xc] sm:$0xf]
        %v618 = vld [vmem:[%s1 + $0x10] sm:$0xf]
        %v619 = vld [vmem:[%s1 + $0x14] sm:$0xf]
        %v620 = vld [vmem:[%s1 + $0x18] sm:$0xf]
        %v621 = vld [vmem:[%s1 + $0x1c] sm:$0xf]
        %v622 = vld [vmem:[%s1 + $0x20] sm:$0xf]
        %v623 = vld [vmem:[%s1 + $0x24] sm:$0xf]
        %v624 = vld [vmem:[%s1 + $0x28] sm:$0xf]
        %v625 = vld [vmem:[%s1 + $0x2c] sm:$0xf]
        %v626 = vld [vmem:[%s1 + $0x30] sm:$0xf]
        %v627 = vld [vmem:[%s1 + $0x34] sm:$0xf]
        %v628 = vld [vmem:[%s1 + $0x38] sm:$0xf]
        %v629 = vld [vmem:[%s1 + $0x3c] sm:$0xf]
        %v630 = vld [vmem:[#allocation2] sm:$0x1]
        %v632 = vperm.slane %v630, 0
        %v638 = vunpack.c.l.b16 %v610
        %v639 = vunpack.c.l.b16 %v611
        %v640 = vunpack.c.l.b16 %v612
        %v641 = vunpack.c.l.b16 %v613
        %v642 = vpack.c.b16 %v639, %v638
        %v643 = vpack.c.b16 %v641, %v640
        %v662 = vunpack.c.l.b16 %v614
        %v663 = vunpack.c.l.b16 %v615
        %v664 = vunpack.c.l.b16 %v616
        %v665 = vunpack.c.l.b16 %v617
        %v666 = vunpack.c.l.b16 %v618
        %v667 = vunpack.c.l.b16 %v619
        %v668 = vunpack.c.l.b16 %v620
        %v669 = vunpack.c.l.b16 %v621
        %v670 = vunpack.c.l.b16 %v622
        %v671 = vunpack.c.l.b16 %v623
        %v672 = vunpack.c.l.b16 %v624
        %v673 = vunpack.c.l.b16 %v625
        %v674 = vunpack.c.l.b16 %v626
        %v675 = vunpack.c.l.b16 %v627
        %v676 = vunpack.c.l.b16 %v628
        %v677 = vunpack.c.l.b16 %v629
        %v678 = vpack.c.b16 %v663, %v662
        %v679 = vpack.c.b16 %v665, %v664
        %v680 = vpack.c.b16 %v667, %v666
        %v681 = vpack.c.b16 %v669, %v668
        %v682 = vpack.c.b16 %v671, %v670
        %v683 = vpack.c.b16 %v673, %v672
        %v684 = vpack.c.b16 %v675, %v674
        %v685 = vpack.c.b16 %v677, %v676
        %694 = vmatpush.bf16.msra.mxu0 %v685
        %695 = vmatpush.bf16.msra.mxu0 %v684
        %696 = vmatpush.bf16.msra.mxu0 %v683
        %697 = vmatpush.bf16.msra.mxu0 %v682
        %698 = vmatpush.bf16.msra.mxu0 %v681
        %699 = vmatpush.bf16.msra.mxu0 %v680
        %700 = vmatpush.bf16.msra.mxu0 %v679
        %701 = vmatpush.bf16.msra.mxu0 %v678
        %702 = vmatmul.bf16.gmra.mxu0 %v642
        %v703 = vpop.f32.mrf.mxu0
        %v704 = vadd.f32 %v632, %v703
        %v705 = vpop.f32.mrf.mxu0
        %v706 = vadd.f32 %v632, %v705
        %707 = vmatmul.bf16.gmra.mxu0 %v643
        %v708 = vpop.f32.mrf.mxu0
        %v709 = vadd.f32 %v632, %v708
        %v710 = vpop.f32.mrf.mxu0
        %v711 = vadd.f32 %v632, %v710
        %712 = vdwg.mxu0
        %v713 = vmax.f32 %v704, 0.0
        %v714 = vmax.f32 %v706, 0.0
        %v715 = vmax.f32 %v709, 0.0
        %v716 = vmax.f32 %v711, 0.0
        %v717 = vpack.c.bf16 %v714, %v713
        %v718 = vpack.c.bf16 %v716, %v715
        %v719 = vld [vmem:[#allocation4] sm:$0xf]
        %v720 = vld [vmem:[#allocation4 + $0x4] sm:$0xf]
        %v721 = vld [vmem:[#allocation4 + $0x8] sm:$0xf]
        %v722 = vld [vmem:[#allocation4 + $0xc] sm:$0xf]
        %v723 = vld [vmem:[#allocation4 + $0x10] sm:$0xf]
        %v724 = vld [vmem:[#allocation4 + $0x14] sm:$0xf]
        %v725 = vld [vmem:[#allocation4 + $0x18] sm:$0xf]
        %v726 = vld [vmem:[#allocation4 + $0x1c] sm:$0xf]
        %v727 = vld [vmem:[#allocation4 + $0x20] sm:$0xf]
        %v728 = vld [vmem:[#allocation4 + $0x24] sm:$0xf]
        %v729 = vld [vmem:[#allocation4 + $0x28] sm:$0xf]
        %v730 = vld [vmem:[#allocation4 + $0x2c] sm:$0xf]
        %v731 = vld [vmem:[#allocation4 + $0x30] sm:$0xf]
        %v732 = vld [vmem:[#allocation4 + $0x34] sm:$0xf]
        %v733 = vld [vmem:[#allocation4 + $0x38] sm:$0xf]
        %v734 = vld [vmem:[#allocation4 + $0x3c] sm:$0xf]
        %v735 = vld [vmem:[#allocation6] sm:$0x1]
        %v737 = vperm.slane %v735, 0
        %v755 = vunpack.c.l.b16 %v719
        %v756 = vunpack.c.l.b16 %v720
        %v757 = vunpack.c.l.b16 %v721
        %v758 = vunpack.c.l.b16 %v722
        %v759 = vunpack.c.l.b16 %v723
        %v760 = vunpack.c.l.b16 %v724
        %v761 = vunpack.c.l.b16 %v725
        %v762 = vunpack.c.l.b16 %v726
        %v763 = vunpack.c.l.b16 %v727
        %v764 = vunpack.c.l.b16 %v728
        %v765 = vunpack.c.l.b16 %v729
        %v766 = vunpack.c.l.b16 %v730
        %v767 = vunpack.c.l.b16 %v731
        %v768 = vunpack.c.l.b16 %v732
        %v769 = vunpack.c.l.b16 %v733
        %v770 = vunpack.c.l.b16 %v734
        %v771 = vpack.c.b16 %v756, %v755
        %v772 = vpack.c.b16 %v758, %v757
        %v773 = vpack.c.b16 %v760, %v759
        %v774 = vpack.c.b16 %v762, %v761
        %v775 = vpack.c.b16 %v764, %v763
        %v776 = vpack.c.b16 %v766, %v765
        %v777 = vpack.c.b16 %v768, %v767
        %v778 = vpack.c.b16 %v770, %v769
        %787 = vmatpush.bf16.msra.mxu0 %v778
        %788 = vmatpush.bf16.msra.mxu0 %v777
        %789 = vmatpush.bf16.msra.mxu0 %v776
        %790 = vmatpush.bf16.msra.mxu0 %v775
        %791 = vmatpush.bf16.msra.mxu0 %v774
        %792 = vmatpush.bf16.msra.mxu0 %v773
        %793 = vmatpush.bf16.msra.mxu0 %v772
        %794 = vmatpush.bf16.msra.mxu0 %v771
        %795 = vmatmul.bf16.gmra.mxu0 %v717
        %v796 = vpop.f32.mrf.mxu0
        %v797 = vadd.f32 %v737, %v796
        %v798 = vpop.f32.mrf.mxu0
        %v799 = vadd.f32 %v737, %v798
        %800 = vmatmul.bf16.gmra.mxu0 %v718
        %v801 = vpop.f32.mrf.mxu0
        %v802 = vadd.f32 %v737, %v801
        %v803 = vpop.f32.mrf.mxu0
        %v804 = vadd.f32 %v737, %v803
        %805 = vdwg.mxu0
        %v806 = vmax.f32 %v797, 0.0
        %v807 = vmax.f32 %v799, 0.0
        %v808 = vmax.f32 %v802, 0.0
        %v809 = vmax.f32 %v804, 0.0
        %v810 = vpack.c.bf16 %v807, %v806
        %v811 = vpack.c.bf16 %v809, %v808
        %v812 = vld [vmem:[#allocation7] sm:$0xf]
        %v813 = vld [vmem:[#allocation7 + $0x4] sm:$0xf]
        %v814 = vld [vmem:[#allocation7 + $0x8] sm:$0xf]
        %v815 = vld [vmem:[#allocation7 + $0xc] sm:$0xf]
        %v816 = vld [vmem:[#allocation7 + $0x10] sm:$0xf]
        %v817 = vld [vmem:[#allocation7 + $0x14] sm:$0xf]
        %v818 = vld [vmem:[#allocation7 + $0x18] sm:$0xf]
        %v819 = vld [vmem:[#allocation7 + $0x1c] sm:$0xf]
        %v820 = vld [vmem:[#allocation7 + $0x20] sm:$0xf]
        %v821 = vld [vmem:[#allocation7 + $0x24] sm:$0xf]
        %v822 = vld [vmem:[#allocation7 + $0x28] sm:$0xf]
        %v823 = vld [vmem:[#allocation7 + $0x2c] sm:$0xf]
        %v824 = vld [vmem:[#allocation7 + $0x30] sm:$0xf]
        %v825 = vld [vmem:[#allocation7 + $0x34] sm:$0xf]
        %v826 = vld [vmem:[#allocation7 + $0x38] sm:$0xf]
        %v827 = vld [vmem:[#allocation7 + $0x3c] sm:$0xf]
        %v828 = vld [vmem:[#allocation9] sm:$0x1]
        %v830 = vperm.slane %v828, 0
        %v848 = vunpack.c.l.b16 %v812
        %v849 = vunpack.c.l.b16 %v813
        %v850 = vunpack.c.l.b16 %v814
        %v851 = vunpack.c.l.b16 %v815
        %v852 = vunpack.c.l.b16 %v816
        %v853 = vunpack.c.l.b16 %v817
        %v854 = vunpack.c.l.b16 %v818
        %v855 = vunpack.c.l.b16 %v819
        %v856 = vunpack.c.l.b16 %v820
        %v857 = vunpack.c.l.b16 %v821
        %v858 = vunpack.c.l.b16 %v822
        %v859 = vunpack.c.l.b16 %v823
        %v860 = vunpack.c.l.b16 %v824
        %v861 = vunpack.c.l.b16 %v825
        %v862 = vunpack.c.l.b16 %v826
        %v863 = vunpack.c.l.b16 %v827
        %v864 = vpack.c.b16 %v849, %v848
        %v865 = vpack.c.b16 %v851, %v850
        %v866 = vpack.c.b16 %v853, %v852
        %v867 = vpack.c.b16 %v855, %v854
        %v868 = vpack.c.b16 %v857, %v856
        %v869 = vpack.c.b16 %v859, %v858
        %v870 = vpack.c.b16 %v861, %v860
        %v871 = vpack.c.b16 %v863, %v862
        %880 = vmatpush.bf16.msra.mxu0 %v871
        %881 = vmatpush.bf16.msra.mxu0 %v870
        %882 = vmatpush.bf16.msra.mxu0 %v869
        %883 = vmatpush.bf16.msra.mxu0 %v868
        %884 = vmatpush.bf16.msra.mxu0 %v867
        %885 = vmatpush.bf16.msra.mxu0 %v866
        %886 = vmatpush.bf16.msra.mxu0 %v865
        %887 = vmatpush.bf16.msra.mxu0 %v864
        %888 = vmatmul.bf16.gmra.mxu0 %v810
        %v889 = vpop.f32.mrf.mxu0
        %v890 = vadd.f32 %v830, %v889
        %v891 = vpop.f32.mrf.mxu0
        %v892 = vadd.f32 %v830, %v891
        %893 = vmatmul.bf16.gmra.mxu0 %v811
        %v894 = vpop.f32.mrf.mxu0
        %v895 = vadd.f32 %v830, %v894
        %v896 = vpop.f32.mrf.mxu0
        %v897 = vadd.f32 %v830, %v896
        %898 = vdwg.mxu0
        %899 = vst [vmem:[%s602] sm:$0xff] %v890
        %900 = vst [vmem:[%s602 + $0x8] sm:$0xff] %v892
        %901 = vst [vmem:[%s602 + $0x10] sm:$0xff] %v895
        %902 = vst [vmem:[%s602 + $0x18] sm:$0xff] %v897
        %v903 = vpack.c.bf16 %v892, %v890
        %v904 = vpack.c.bf16 %v897, %v895
        %v905 = vld [vmem:[#allocation10] sm:$0xf]
        %v906 = vld [vmem:[#allocation10 + $0x4] sm:$0xf]
        %v907 = vld [vmem:[#allocation10 + $0x8] sm:$0xf]
        %v908 = vld [vmem:[#allocation10 + $0xc] sm:$0xf]
        %v909 = vld [vmem:[#allocation10 + $0x10] sm:$0xf]
        %v910 = vld [vmem:[#allocation10 + $0x14] sm:$0xf]
        %v911 = vld [vmem:[#allocation10 + $0x18] sm:$0xf]
        %v912 = vld [vmem:[#allocation10 + $0x1c] sm:$0xf]
        %v913 = vld [vmem:[#allocation10 + $0x20] sm:$0xf]
        %v914 = vld [vmem:[#allocation10 + $0x24] sm:$0xf]
        %v915 = vld [vmem:[#allocation10 + $0x28] sm:$0xf]
        %v916 = vld [vmem:[#allocation10 + $0x2c] sm:$0xf]
        %v917 = vld [vmem:[#allocation10 + $0x30] sm:$0xf]
        %v918 = vld [vmem:[#allocation10 + $0x34] sm:$0xf]
        %v919 = vld [vmem:[#allocation10 + $0x38] sm:$0xf]
        %v920 = vld [vmem:[#allocation10 + $0x3c] sm:$0xf]
        %v921 = vld [vmem:[#allocation12] sm:$0x1]
        %v923 = vperm.slane %v921, 0
        %v941 = vunpack.c.l.b16 %v905
        %v942 = vunpack.c.l.b16 %v906
        %v943 = vunpack.c.l.b16 %v907
        %v944 = vunpack.c.l.b16 %v908
        %v945 = vunpack.c.l.b16 %v909
        %v946 = vunpack.c.l.b16 %v910
        %v947 = vunpack.c.l.b16 %v911
        %v948 = vunpack.c.l.b16 %v912
        %v949 = vunpack.c.l.b16 %v913
        %v950 = vunpack.c.l.b16 %v914
        %v951 = vunpack.c.l.b16 %v915
        %v952 = vunpack.c.l.b16 %v916
        %v953 = vunpack.c.l.b16 %v917
        %v954 = vunpack.c.l.b16 %v918
        %v955 = vunpack.c.l.b16 %v919
        %v956 = vunpack.c.l.b16 %v920
        %v957 = vpack.c.b16 %v942, %v941
        %v958 = vpack.c.b16 %v944, %v943
        %v959 = vpack.c.b16 %v946, %v945
        %v960 = vpack.c.b16 %v948, %v947
        %v961 = vpack.c.b16 %v950, %v949
        %v962 = vpack.c.b16 %v952, %v951
        %v963 = vpack.c.b16 %v954, %v953
        %v964 = vpack.c.b16 %v956, %v955
        %973 = vmatpush.bf16.msra.mxu0 %v964
        %974 = vmatpush.bf16.msra.mxu0 %v963
        %975 = vmatpush.bf16.msra.mxu0 %v962
        %976 = vmatpush.bf16.msra.mxu0 %v961
        %977 = vmatpush.bf16.msra.mxu0 %v960
        %978 = vmatpush.bf16.msra.mxu0 %v959
        %979 = vmatpush.bf16.msra.mxu0 %v958
        %980 = vmatpush.bf16.msra.mxu0 %v957
        %981 = vmatmul.bf16.gmra.mxu0 %v903
        %v982 = vpop.f32.mrf.mxu0
        %v983 = vadd.f32 %v923, %v982
        %v984 = vpop.f32.mrf.mxu0
        %v985 = vadd.f32 %v923, %v984
        %986 = vmatmul.bf16.gmra.mxu0 %v904
        %v987 = vpop.f32.mrf.mxu0
        %v988 = vadd.f32 %v923, %v987
        %v989 = vpop.f32.mrf.mxu0
        %v990 = vadd.f32 %v923, %v989
        %991 = vdwg.mxu0
        %v992 = vmax.f32 %v983, 0.0
        %v993 = vmax.f32 %v985, 0.0
        %v994 = vmax.f32 %v988, 0.0
        %v995 = vmax.f32 %v990, 0.0
        %v996 = vpack.c.bf16 %v993, %v992
        %v997 = vpack.c.bf16 %v995, %v994
        %v998 = vld [vmem:[%s9] sm:$0xf]
        %v999 = vld [vmem:[%s9 + $0x4] sm:$0xf]
        %v1000 = vld [vmem:[%s9 + $0x8] sm:$0xf]
        %v1001 = vld [vmem:[%s9 + $0xc] sm:$0xf]
        %v1002 = vld [vmem:[%s9 + $0x10] sm:$0xf]
        %v1003 = vld [vmem:[%s9 + $0x14] sm:$0xf]
        %v1004 = vld [vmem:[%s9 + $0x18] sm:$0xf]
        %v1005 = vld [vmem:[%s9 + $0x1c] sm:$0xf]
        %v1006 = vld [vmem:[%s9 + $0x20] sm:$0xf]
        %v1007 = vld [vmem:[%s9 + $0x24] sm:$0xf]
        %v1008 = vld [vmem:[%s9 + $0x28] sm:$0xf]
        %v1009 = vld [vmem:[%s9 + $0x2c] sm:$0xf]
        %v1010 = vld [vmem:[%s9 + $0x30] sm:$0xf]
        %v1011 = vld [vmem:[%s9 + $0x34] sm:$0xf]
        %v1012 = vld [vmem:[%s9 + $0x38] sm:$0xf]
        %v1013 = vld [vmem:[%s9 + $0x3c] sm:$0xf]
        %v1014 = vld [vmem:[%s10] sm:$0x1]
        %v1016 = vperm.slane %v1014, 0
        %v1034 = vunpack.c.l.b16 %v998
        %v1035 = vunpack.c.l.b16 %v999
        %v1036 = vunpack.c.l.b16 %v1000
        %v1037 = vunpack.c.l.b16 %v1001
        %v1038 = vunpack.c.l.b16 %v1002
        %v1039 = vunpack.c.l.b16 %v1003
        %v1040 = vunpack.c.l.b16 %v1004
        %v1041 = vunpack.c.l.b16 %v1005
        %v1042 = vunpack.c.l.b16 %v1006
        %v1043 = vunpack.c.l.b16 %v1007
        %v1044 = vunpack.c.l.b16 %v1008
        %v1045 = vunpack.c.l.b16 %v1009
        %v1046 = vunpack.c.l.b16 %v1010
        %v1047 = vunpack.c.l.b16 %v1011
        %v1048 = vunpack.c.l.b16 %v1012
        %v1049 = vunpack.c.l.b16 %v1013
        %v1050 = vpack.c.b16 %v1035, %v1034
        %v1051 = vpack.c.b16 %v1037, %v1036
        %v1052 = vpack.c.b16 %v1039, %v1038
        %v1053 = vpack.c.b16 %v1041, %v1040
        %v1054 = vpack.c.b16 %v1043, %v1042
        %v1055 = vpack.c.b16 %v1045, %v1044
        %v1056 = vpack.c.b16 %v1047, %v1046
        %v1057 = vpack.c.b16 %v1049, %v1048
        %1066 = vmatpush.bf16.msra.mxu0 %v1057
        %1067 = vmatpush.bf16.msra.mxu0 %v1056
        %1068 = vmatpush.bf16.msra.mxu0 %v1055
        %1069 = vmatpush.bf16.msra.mxu0 %v1054
        %1070 = vmatpush.bf16.msra.mxu0 %v1053
        %1071 = vmatpush.bf16.msra.mxu0 %v1052
        %1072 = vmatpush.bf16.msra.mxu0 %v1051
        %1073 = vmatpush.bf16.msra.mxu0 %v1050
        %1074 = vmatmul.bf16.gmra.mxu0 %v996
        %v1075 = vpop.f32.mrf.mxu0
        %v1076 = vadd.f32 %v1016, %v1075
        %v1077 = vpop.f32.mrf.mxu0
        %v1078 = vadd.f32 %v1016, %v1077
        %1079 = vmatmul.bf16.gmra.mxu0 %v997
        %v1080 = vpop.f32.mrf.mxu0
        %v1081 = vadd.f32 %v1016, %v1080
        %v1082 = vpop.f32.mrf.mxu0
        %v1083 = vadd.f32 %v1016, %v1082
        %1084 = vdwg.mxu0
        %v1085 = vmax.f32 %v1076, 0.0
        %v1086 = vmax.f32 %v1078, 0.0
        %v1087 = vmax.f32 %v1081, 0.0
        %v1088 = vmax.f32 %v1083, 0.0
        %v1089 = vpack.c.bf16 %v1086, %v1085
        %v1090 = vpack.c.bf16 %v1088, %v1087
        %v1091 = vld [vmem:[#allocation13] sm:$0xf]
        %v1092 = vld [vmem:[#allocation13 + $0x4] sm:$0xf]
        %v1093 = vld [vmem:[#allocation13 + $0x8] sm:$0xf]
        %v1094 = vld [vmem:[#allocation13 + $0xc] sm:$0xf]
        %v1095 = vld [vmem:[#allocation13 + $0x10] sm:$0xf]
        %v1096 = vld [vmem:[#allocation13 + $0x14] sm:$0xf]
        %v1097 = vld [vmem:[#allocation13 + $0x18] sm:$0xf]
        %v1098 = vld [vmem:[#allocation13 + $0x1c] sm:$0xf]
        %v1099 = vld [vmem:[#allocation13 + $0x20] sm:$0xf]
        %v1100 = vld [vmem:[#allocation13 + $0x24] sm:$0xf]
        %v1101 = vld [vmem:[#allocation13 + $0x28] sm:$0xf]
        %v1102 = vld [vmem:[#allocation13 + $0x2c] sm:$0xf]
        %v1103 = vld [vmem:[#allocation13 + $0x30] sm:$0xf]
        %v1104 = vld [vmem:[#allocation13 + $0x34] sm:$0xf]
        %v1105 = vld [vmem:[#allocation13 + $0x38] sm:$0xf]
        %v1106 = vld [vmem:[#allocation13 + $0x3c] sm:$0xf]
        %v1107 = vld [vmem:[%s12] sm:$0x1]
        %v1109 = vperm.slane %v1107, 0
        %v1127 = vunpack.c.l.b16 %v1091
        %v1128 = vunpack.c.l.b16 %v1092
        %v1129 = vunpack.c.l.b16 %v1093
        %v1130 = vunpack.c.l.b16 %v1094
        %v1131 = vunpack.c.l.b16 %v1095
        %v1132 = vunpack.c.l.b16 %v1096
        %v1133 = vunpack.c.l.b16 %v1097
        %v1134 = vunpack.c.l.b16 %v1098
        %v1135 = vunpack.c.l.b16 %v1099
        %v1136 = vunpack.c.l.b16 %v1100
        %v1137 = vunpack.c.l.b16 %v1101
        %v1138 = vunpack.c.l.b16 %v1102
        %v1139 = vunpack.c.l.b16 %v1103
        %v1140 = vunpack.c.l.b16 %v1104
        %v1141 = vunpack.c.l.b16 %v1105
        %v1142 = vunpack.c.l.b16 %v1106
        %v1143 = vpack.c.b16 %v1128, %v1127
        %v1144 = vpack.c.b16 %v1130, %v1129
        %v1145 = vpack.c.b16 %v1132, %v1131
        %v1146 = vpack.c.b16 %v1134, %v1133
        %v1147 = vpack.c.b16 %v1136, %v1135
        %v1148 = vpack.c.b16 %v1138, %v1137
        %v1149 = vpack.c.b16 %v1140, %v1139
        %v1150 = vpack.c.b16 %v1142, %v1141
        %1159 = vmatpush.bf16.msra.mxu0 %v1150
        %1160 = vmatpush.bf16.msra.mxu0 %v1149
        %1161 = vmatpush.bf16.msra.mxu0 %v1148
        %1162 = vmatpush.bf16.msra.mxu0 %v1147
        %1163 = vmatpush.bf16.msra.mxu0 %v1146
        %1164 = vmatpush.bf16.msra.mxu0 %v1145
        %1165 = vmatpush.bf16.msra.mxu0 %v1144
        %1166 = vmatpush.bf16.msra.mxu0 %v1143
        %1167 = vmatmul.bf16.gmra.mxu0 %v1089
        %v1168 = vpop.f32.mrf.mxu0
        %v1169 = vadd.f32 %v1109, %v1168
        %v1170 = vpop.f32.mrf.mxu0
        %v1171 = vadd.f32 %v1109, %v1170
        %1172 = vmatmul.bf16.gmra.mxu0 %v1090
        %v1173 = vpop.f32.mrf.mxu0
        %v1174 = vadd.f32 %v1109, %v1173
        %v1175 = vpop.f32.mrf.mxu0
        %v1176 = vadd.f32 %v1109, %v1175
        %1177 = vdwg.mxu0
        %1178 = vst [vmem:[%s608] sm:$0xff] %v1169
        %1179 = vst [vmem:[%s608 + $0x8] sm:$0xff] %v1171
        %1180 = vst [vmem:[%s608 + $0x10] sm:$0xff] %v1174
        %1181 = vst [vmem:[%s608 + $0x18] sm:$0xff] %v1176
        %s1182 = smul.u32 4, %s31
        %p1183 = scmp.lt.s32.totalorder %s1182, 7
        %s1184 = scalar_select %p1183, %s1182, 7
        %s1185 = smul.addr %s1184, 8
        %s1186 = scalar_lea.vmem %s13, %s1185
        %s1187 = smul.u32 4, %s31
        %p1188 = scmp.lt.s32.totalorder %s1187, 7
        %s1189 = scalar_select %p1188, %s1187, 7
        %s1190 = smul.addr %s1189, 8
        %s1191 = scalar_lea.vmem %s14, %s1190
        // Predicated region
        $region105: #{ae_forward.1} parent=71 // pred_check
          %p1192 = pneg %p327
        $region106: #{ae_forward.1} parent=71 // pred_check_branch
          %1194 = sbr.rel (%p1192) target = $region108
        $region107: #{ae_forward.1} parent=71 // pred_region
          %s1195 = smul.u32 4, %s31
        $region108: #{ae_forward.1} parent=71 // pred_fallthru
          _
        // Predicated region
        $region109: #{ae_forward.1} parent=71 // pred_check
          %p1196 = pneg %p353
        $region110: #{ae_forward.1} parent=71 // pred_check_branch
          %1198 = sbr.rel (%p1196) target = $region112
        $region111: #{ae_forward.1} parent=71 // pred_region
          %s1199 = smul.u32 4, %s31
        $region112: #{ae_forward.1} parent=71 // pred_fallthru
          _
      $region72: #{ae_forward.1} parent=5 // pred_fallthru
        _
      %p1200 = scmp.le.s32.totalorder 2, %s26
      // Predicated region
      $region113: #{ae_forward.1} parent=5 // pred_check
        %p1201 = pneg %p1200
      $region114: #{ae_forward.1} parent=5 // pred_check_branch
        %1203 = sbr.rel (%p1201) target = $region116
      $region115: #{ae_forward.1} parent=5 // pred_region
        %s1204 = ssub.s32 %s26, 2
        // Predicated region
        $region117: #{ae_forward.1} parent=115 // pred_check
          %p1205 = pneg %p333
        $region118: #{ae_forward.1} parent=115 // pred_check_branch
          %1207 = sbr.rel (%p1205) target = $region120
        $region119: #{ae_forward.1} parent=115 // pred_region
          %s1208 = smul.u32 4, %s32
          %p1209 = scmp.lt.s32.totalorder %s1208, 7
          %s1210 = scalar_select %p1209, %s1208, 7
          %s1211 = smul.addr %s1210, 8
          %s1212 = scalar_lea.vmem %s13, %s1211
        $region120: #{ae_forward.1} parent=115 // pred_fallthru
          _
        // Predicated region
        $region121: #{ae_forward.1} parent=115 // pred_check
          %p1213 = pneg %p359
        $region122: #{ae_forward.1} parent=115 // pred_check_branch
          %1215 = sbr.rel (%p1213) target = $region124
        $region123: #{ae_forward.1} parent=115 // pred_region
          %s1216 = smul.u32 4, %s32
          %p1217 = scmp.lt.s32.totalorder %s1216, 7
          %s1218 = scalar_select %p1217, %s1216, 7
          %s1219 = smul.addr %s1218, 8
          %s1220 = scalar_lea.vmem %s14, %s1219
        $region124: #{ae_forward.1} parent=115 // pred_fallthru
          _
      $region116: #{ae_forward.1} parent=5 // pred_fallthru
        _
    $region6: #{ae_forward.1} parent=1 // loop_footer
      %s30 = sadd.s32 1, %s26
    $region7: #{ae_forward.1} parent=1 // loop_footer_branch
      %25 = sbr.rel target = $region3
    $region8: #{ae_forward.1} parent=1 // loop_exit
      _
    %1221 = vsyncpa [#allocation3], 1
    %s1222 = scalar_lea.sflag [#allocation3], 1
    %1223 = vsyncpa %s1222, 1
    %1224 = vsyncpa [#allocation5], 1
    %1225 = vsyncpa [#allocation8], 1
    %1226 = vsyncpa [#allocation11], 1
    %1227 = vsyncpa [#allocation14], 1

</llo_original>
